<compile_context>
chip_gen: v5e
topology: v5e:2x2
jax: 0.10.0
libtpu: 0.0.40
codegen_flags: <defaults>
</compile_context>

<pallas_src>
import functools

import jax
import jax.numpy as jnp
from jax.experimental import pallas as pl
from jax.experimental.pallas import tpu as pltpu

LANE = 128          # lane width (batch groups of 128)
TN_MAX = 4096       # max batch-tile (rows) per grid step


def _sigmoid(z):
    # exp lowers to the EUP slot; exact fp32 (matches the PyTorch reference)
    return 1.0 / (1.0 + jnp.exp(-z))


def _mlp_kernel(p_ref, x_ref, o_ref):
    """Unrolled 2->3->2->2 MLP on a (2, G, 128) batch tile.

    p_ref : SMEM f32[23] packed [w1(3,2), b1(3), w2(2,3), b2(2), w3(2,2), b3(2)]
    x_ref : VMEM f32[2, G, 128]  input features on the leading axis
    o_ref : VMEM f32[2, G, 128]  output features on the leading axis
    """
    x0 = x_ref[0, :, :]
    x1 = x_ref[1, :, :]

    # fc1 (2 -> 3) + sigmoid : VPU broadcast FMAs with SMEM scalar weights
    h = [
        _sigmoid(p_ref[2 * j] * x0 + p_ref[2 * j + 1] * x1 + p_ref[6 + j])
        for j in range(3)
    ]
    # fc2 (3 -> 2) + sigmoid
    g = [
        _sigmoid(
            p_ref[9 + 3 * k] * h[0]
            + p_ref[10 + 3 * k] * h[1]
            + p_ref[11 + 3 * k] * h[2]
            + p_ref[15 + k]
        )
        for k in range(2)
    ]
    # fc3 (2 -> 2), no activation; lane-dense unmasked stores
    for m in range(2):
        o_ref[m, :, :] = (
            p_ref[17 + 2 * m] * g[0] + p_ref[18 + 2 * m] * g[1] + p_ref[21 + m]
        )


def _round_up(a, b):
    return ((a + b - 1) // b) * b


def network_forward(x, params):
    """x: (B, 2) float32.  params: ((w1,b1),(w2,b2),(w3,b3)) in PyTorch layout."""
    (w1, b1), (w2, b2), (w3, b3) = params
    B = x.shape[0]
    in_features = w1.shape[1]      # 2
    out_features = w3.shape[0]     # 2

    # Pack the 23 scalars for SMEM.
    p = jnp.concatenate(
        [w1.reshape(-1), b1.reshape(-1),
         w2.reshape(-1), b2.reshape(-1),
         w3.reshape(-1), b3.reshape(-1)]
    ).astype(jnp.float32)

    # Batch tiling (lane-dense on batch).
    if B <= 8 * LANE:
        # Single step: block equals the full (small) array -> always legal.
        tn = max(LANE, _round_up(B, LANE))
    else:
        # >=2 steps (v7x megacore).  Tile is a multiple of 1024 rows so the
        # block's sublane dim (tn/128) stays a multiple of 8.
        tn = min(TN_MAX, _round_up((B + 1) // 2, 8 * LANE))
    b_pad = _round_up(B, tn)

    # (B, 2) -> (2, B) -> zero-pad batch -> (2, b_pad/128, 128).
    # These are tiny copies (only the real 2*B floats + pad), not 128-wide
    # feature-padded slabs.
    xt = jnp.transpose(x.astype(jnp.float32))
    if b_pad != B:
        xt = jnp.pad(xt, ((0, 0), (0, b_pad - B)))
    xt = xt.reshape(in_features, b_pad // LANE, LANE)

    g_blk = tn // LANE
    grid = (b_pad // tn,)

    out = pl.pallas_call(
        _mlp_kernel,
        out_shape=jax.ShapeDtypeStruct(
            (out_features, b_pad // LANE, LANE), jnp.float32),
        grid_spec=pltpu.PrefetchScalarGridSpec(
            num_scalar_prefetch=0,
            grid=grid,
            in_specs=[
                # 23 packed weight/bias scalars, whole array in SMEM
                pl.BlockSpec(memory_space=pltpu.MemorySpace.SMEM),
                # batch tile of the transposed input
                pl.BlockSpec((in_features, g_blk, LANE), lambda i: (0, i, 0)),
            ],
            out_specs=pl.BlockSpec((out_features, g_blk, LANE),
                                   lambda i: (0, i, 0)),
        ),
        compiler_params=pltpu.CompilerParams(
            dimension_semantics=("parallel",),
        ),
    )(p, xt)

    # Undo the layout: (2, b_pad/128, 128) -> (2, b_pad) -> slice -> (B, 2).
    return jnp.transpose(out.reshape(out_features, b_pad)[:, :B])


if __name__ == "__main__":
    # Exact weights from the PyTorch module (Linear stores W as (out, in)).
    w1 = jnp.array([[0.1, 0.2], [0.3, 0.4], [0.5, 0.6]], dtype=jnp.float32)
    b1 = jnp.array([0.1, 0.2, 0.3], dtype=jnp.float32)
    w2 = jnp.array([[0.1, 0.2, 0.3], [0.4, 0.5, 0.6]], dtype=jnp.float32)
    b2 = jnp.array([0.1, 0.2], dtype=jnp.float32)
    w3 = jnp.array([[0.1, 0.2], [0.3, 0.4]], dtype=jnp.float32)
    b3 = jnp.array([0.1, 0.2], dtype=jnp.float32)
    params = ((w1, b1), (w2, b2), (w3, b3))

    key = jax.random.PRNGKey(0)
    x = jax.random.normal(key, (4, 2), dtype=jnp.float32)

    fwd = jax.jit(functools.partial(network_forward, params=params))
    y = jax.block_until_ready(fwd(x))

    # Pure-JAX reference (same semantics as the PyTorch forward).
    def ref(xx):
        a2 = 1.0 / (1.0 + jnp.exp(-(xx @ w1.T + b1)))
        a3 = 1.0 / (1.0 + jnp.exp(-(a2 @ w2.T + b2)))
        return a3 @ w3.T + b3

    y_ref = ref(x)
    assert y.shape == y_ref.shape, (y.shape, y_ref.shape)
    assert jnp.allclose(y, y_ref, atol=1e-4, rtol=1e-4), (y, y_ref)
    print("KERNEL_OK")
</pallas_src>

<mosaic_0001>
module attributes {stable_mosaic.version = 11 : i64} {
  func.func @_mlp_kernel(%arg0: i32, %arg1: memref<23xf32, #tpu.memory_space<smem>>, %arg2: memref<2x1x128xf32, #tpu.memory_space<vmem>>, %arg3: memref<2x1x128xf32, #tpu.memory_space<vmem>>) attributes {dimension_semantics = [#tpu.dimension_semantics<parallel>], iteration_bounds = array<i64: 1>, scalar_prefetch = 0 : i64, scratch_operands = 0 : i64, tpu.core_type = #tpu.core_type<tc>, window_params = [{transform_indices = @transform_0, window_bounds = array<i64: 23>}, {transform_indices = @transform_1, window_bounds = array<i64: 2, 1, 128>}, {transform_indices = @transform_2, window_bounds = array<i64: 2, 1, 128>}]} {
    %c0 = arith.constant 0 : index
    %c0_0 = arith.constant 0 : index
    %c0_1 = arith.constant 0 : index
    %0 = vector.load %arg2[%c0, %c0_0, %c0_1] : memref<2x1x128xf32, #tpu.memory_space<vmem>>, vector<1x1x128xf32>
    %1 = vector.shape_cast %0 : vector<1x1x128xf32> to vector<1x128xf32>
    %c1 = arith.constant 1 : index
    %c0_2 = arith.constant 0 : index
    %c0_3 = arith.constant 0 : index
    %2 = vector.load %arg2[%c1, %c0_2, %c0_3] : memref<2x1x128xf32, #tpu.memory_space<vmem>>, vector<1x1x128xf32>
    %3 = vector.shape_cast %2 : vector<1x1x128xf32> to vector<1x128xf32>
    %c0_4 = arith.constant 0 : index
    %4 = memref.load %arg1[%c0_4] : memref<23xf32, #tpu.memory_space<smem>>
    %5 = vector.broadcast %4 : f32 to vector<1x128xf32>
    %6 = arith.mulf %5, %1 : vector<1x128xf32>
    %c1_5 = arith.constant 1 : index
    %7 = memref.load %arg1[%c1_5] : memref<23xf32, #tpu.memory_space<smem>>
    %8 = vector.broadcast %7 : f32 to vector<1x128xf32>
    %9 = arith.mulf %8, %3 : vector<1x128xf32>
    %10 = arith.addf %6, %9 : vector<1x128xf32>
    %c6 = arith.constant 6 : index
    %11 = memref.load %arg1[%c6] : memref<23xf32, #tpu.memory_space<smem>>
    %12 = vector.broadcast %11 : f32 to vector<1x128xf32>
    %13 = arith.addf %10, %12 : vector<1x128xf32>
    %cst = arith.constant 0.000000e+00 : f32
    %14 = vector.broadcast %cst : f32 to vector<1x128xf32>
    %15 = arith.subf %14, %13 : vector<1x128xf32>
    %16 = math.exp %15 : vector<1x128xf32>
    %cst_6 = arith.constant 1.000000e+00 : f32
    %17 = vector.broadcast %cst_6 : f32 to vector<1x128xf32>
    %18 = arith.addf %17, %16 : vector<1x128xf32>
    %cst_7 = arith.constant 1.000000e+00 : f32
    %19 = vector.broadcast %cst_7 : f32 to vector<1x128xf32>
    %20 = arith.divf %19, %18 : vector<1x128xf32>
    %c2 = arith.constant 2 : index
    %21 = memref.load %arg1[%c2] : memref<23xf32, #tpu.memory_space<smem>>
    %22 = vector.broadcast %21 : f32 to vector<1x128xf32>
    %23 = arith.mulf %22, %1 : vector<1x128xf32>
    %c3 = arith.constant 3 : index
    %24 = memref.load %arg1[%c3] : memref<23xf32, #tpu.memory_space<smem>>
    %25 = vector.broadcast %24 : f32 to vector<1x128xf32>
    %26 = arith.mulf %25, %3 : vector<1x128xf32>
    %27 = arith.addf %23, %26 : vector<1x128xf32>
    %c7 = arith.constant 7 : index
    %28 = memref.load %arg1[%c7] : memref<23xf32, #tpu.memory_space<smem>>
    %29 = vector.broadcast %28 : f32 to vector<1x128xf32>
    %30 = arith.addf %27, %29 : vector<1x128xf32>
    %cst_8 = arith.constant 0.000000e+00 : f32
    %31 = vector.broadcast %cst_8 : f32 to vector<1x128xf32>
    %32 = arith.subf %31, %30 : vector<1x128xf32>
    %33 = math.exp %32 : vector<1x128xf32>
    %cst_9 = arith.constant 1.000000e+00 : f32
    %34 = vector.broadcast %cst_9 : f32 to vector<1x128xf32>
    %35 = arith.addf %34, %33 : vector<1x128xf32>
    %cst_10 = arith.constant 1.000000e+00 : f32
    %36 = vector.broadcast %cst_10 : f32 to vector<1x128xf32>
    %37 = arith.divf %36, %35 : vector<1x128xf32>
    %c4 = arith.constant 4 : index
    %38 = memref.load %arg1[%c4] : memref<23xf32, #tpu.memory_space<smem>>
    %39 = vector.broadcast %38 : f32 to vector<1x128xf32>
    %40 = arith.mulf %39, %1 : vector<1x128xf32>
    %c5 = arith.constant 5 : index
    %41 = memref.load %arg1[%c5] : memref<23xf32, #tpu.memory_space<smem>>
    %42 = vector.broadcast %41 : f32 to vector<1x128xf32>
    %43 = arith.mulf %42, %3 : vector<1x128xf32>
    %44 = arith.addf %40, %43 : vector<1x128xf32>
    %c8 = arith.constant 8 : index
    %45 = memref.load %arg1[%c8] : memref<23xf32, #tpu.memory_space<smem>>
    %46 = vector.broadcast %45 : f32 to vector<1x128xf32>
    %47 = arith.addf %44, %46 : vector<1x128xf32>
    %cst_11 = arith.constant 0.000000e+00 : f32
    %48 = vector.broadcast %cst_11 : f32 to vector<1x128xf32>
    %49 = arith.subf %48, %47 : vector<1x128xf32>
    %50 = math.exp %49 : vector<1x128xf32>
    %cst_12 = arith.constant 1.000000e+00 : f32
    %51 = vector.broadcast %cst_12 : f32 to vector<1x128xf32>
    %52 = arith.addf %51, %50 : vector<1x128xf32>
    %cst_13 = arith.constant 1.000000e+00 : f32
    %53 = vector.broadcast %cst_13 : f32 to vector<1x128xf32>
    %54 = arith.divf %53, %52 : vector<1x128xf32>
    %c9 = arith.constant 9 : index
    %55 = memref.load %arg1[%c9] : memref<23xf32, #tpu.memory_space<smem>>
    %56 = vector.broadcast %55 : f32 to vector<1x128xf32>
    %57 = arith.mulf %56, %20 : vector<1x128xf32>
    %c10 = arith.constant 10 : index
    %58 = memref.load %arg1[%c10] : memref<23xf32, #tpu.memory_space<smem>>
    %59 = vector.broadcast %58 : f32 to vector<1x128xf32>
    %60 = arith.mulf %59, %37 : vector<1x128xf32>
    %61 = arith.addf %57, %60 : vector<1x128xf32>
    %c11 = arith.constant 11 : index
    %62 = memref.load %arg1[%c11] : memref<23xf32, #tpu.memory_space<smem>>
    %63 = vector.broadcast %62 : f32 to vector<1x128xf32>
    %64 = arith.mulf %63, %54 : vector<1x128xf32>
    %65 = arith.addf %61, %64 : vector<1x128xf32>
    %c15 = arith.constant 15 : index
    %66 = memref.load %arg1[%c15] : memref<23xf32, #tpu.memory_space<smem>>
    %67 = vector.broadcast %66 : f32 to vector<1x128xf32>
    %68 = arith.addf %65, %67 : vector<1x128xf32>
    %cst_14 = arith.constant 0.000000e+00 : f32
    %69 = vector.broadcast %cst_14 : f32 to vector<1x128xf32>
    %70 = arith.subf %69, %68 : vector<1x128xf32>
    %71 = math.exp %70 : vector<1x128xf32>
    %cst_15 = arith.constant 1.000000e+00 : f32
    %72 = vector.broadcast %cst_15 : f32 to vector<1x128xf32>
    %73 = arith.addf %72, %71 : vector<1x128xf32>
    %cst_16 = arith.constant 1.000000e+00 : f32
    %74 = vector.broadcast %cst_16 : f32 to vector<1x128xf32>
    %75 = arith.divf %74, %73 : vector<1x128xf32>
    %c12 = arith.constant 12 : index
    %76 = memref.load %arg1[%c12] : memref<23xf32, #tpu.memory_space<smem>>
    %77 = vector.broadcast %76 : f32 to vector<1x128xf32>
    %78 = arith.mulf %77, %20 : vector<1x128xf32>
    %c13 = arith.constant 13 : index
    %79 = memref.load %arg1[%c13] : memref<23xf32, #tpu.memory_space<smem>>
    %80 = vector.broadcast %79 : f32 to vector<1x128xf32>
    %81 = arith.mulf %80, %37 : vector<1x128xf32>
    %82 = arith.addf %78, %81 : vector<1x128xf32>
    %c14 = arith.constant 14 : index
    %83 = memref.load %arg1[%c14] : memref<23xf32, #tpu.memory_space<smem>>
    %84 = vector.broadcast %83 : f32 to vector<1x128xf32>
    %85 = arith.mulf %84, %54 : vector<1x128xf32>
    %86 = arith.addf %82, %85 : vector<1x128xf32>
    %c16 = arith.constant 16 : index
    %87 = memref.load %arg1[%c16] : memref<23xf32, #tpu.memory_space<smem>>
    %88 = vector.broadcast %87 : f32 to vector<1x128xf32>
    %89 = arith.addf %86, %88 : vector<1x128xf32>
    %cst_17 = arith.constant 0.000000e+00 : f32
    %90 = vector.broadcast %cst_17 : f32 to vector<1x128xf32>
    %91 = arith.subf %90, %89 : vector<1x128xf32>
    %92 = math.exp %91 : vector<1x128xf32>
    %cst_18 = arith.constant 1.000000e+00 : f32
    %93 = vector.broadcast %cst_18 : f32 to vector<1x128xf32>
    %94 = arith.addf %93, %92 : vector<1x128xf32>
    %cst_19 = arith.constant 1.000000e+00 : f32
    %95 = vector.broadcast %cst_19 : f32 to vector<1x128xf32>
    %96 = arith.divf %95, %94 : vector<1x128xf32>
    %c17 = arith.constant 17 : index
    %97 = memref.load %arg1[%c17] : memref<23xf32, #tpu.memory_space<smem>>
    %98 = vector.broadcast %97 : f32 to vector<1x128xf32>
    %99 = arith.mulf %98, %75 : vector<1x128xf32>
    %c18 = arith.constant 18 : index
    %100 = memref.load %arg1[%c18] : memref<23xf32, #tpu.memory_space<smem>>
    %101 = vector.broadcast %100 : f32 to vector<1x128xf32>
    %102 = arith.mulf %101, %96 : vector<1x128xf32>
    %103 = arith.addf %99, %102 : vector<1x128xf32>
    %c21 = arith.constant 21 : index
    %104 = memref.load %arg1[%c21] : memref<23xf32, #tpu.memory_space<smem>>
    %105 = vector.broadcast %104 : f32 to vector<1x128xf32>
    %106 = arith.addf %103, %105 : vector<1x128xf32>
    %c0_20 = arith.constant 0 : index
    %c0_21 = arith.constant 0 : index
    %c0_22 = arith.constant 0 : index
    %107 = vector.load %arg3[%c0_20, %c0_21, %c0_22] : memref<2x1x128xf32, #tpu.memory_space<vmem>>, vector<1x1x128xf32>
    %108 = vector.shape_cast %107 : vector<1x1x128xf32> to vector<1x128xf32>
    %109 = vector.shape_cast %106 : vector<1x128xf32> to vector<1x1x128xf32>
    tpu.vector_store %arg3[%c0_20, %c0_21, %c0_22], %109 {strides = array<i32>} : memref<2x1x128xf32, #tpu.memory_space<vmem>>, vector<1x1x128xf32>,
    %c19 = arith.constant 19 : index
    %110 = memref.load %arg1[%c19] : memref<23xf32, #tpu.memory_space<smem>>
    %111 = vector.broadcast %110 : f32 to vector<1x128xf32>
    %112 = arith.mulf %111, %75 : vector<1x128xf32>
    %c20 = arith.constant 20 : index
    %113 = memref.load %arg1[%c20] : memref<23xf32, #tpu.memory_space<smem>>
    %114 = vector.broadcast %113 : f32 to vector<1x128xf32>
    %115 = arith.mulf %114, %96 : vector<1x128xf32>
    %116 = arith.addf %112, %115 : vector<1x128xf32>
    %c22 = arith.constant 22 : index
    %117 = memref.load %arg1[%c22] : memref<23xf32, #tpu.memory_space<smem>>
    %118 = vector.broadcast %117 : f32 to vector<1x128xf32>
    %119 = arith.addf %116, %118 : vector<1x128xf32>
    %c1_23 = arith.constant 1 : index
    %c0_24 = arith.constant 0 : index
    %c0_25 = arith.constant 0 : index
    %120 = vector.load %arg3[%c1_23, %c0_24, %c0_25] : memref<2x1x128xf32, #tpu.memory_space<vmem>>, vector<1x1x128xf32>
    %121 = vector.shape_cast %120 : vector<1x1x128xf32> to vector<1x128xf32>
    %122 = vector.shape_cast %119 : vector<1x128xf32> to vector<1x1x128xf32>
    tpu.vector_store %arg3[%c1_23, %c0_24, %c0_25], %122 {strides = array<i32>} : memref<2x1x128xf32, #tpu.memory_space<vmem>>, vector<1x1x128xf32>,
    return
  }
  func.func @transform_0(%arg0: i32) -> i32 {
    %c0_i32 = arith.constant 0 : i32
    %c0_i32_0 = arith.constant 0 : i32
    return %c0_i32 : i32
  }
  func.func @transform_1(%arg0: i32) -> (i32, i32, i32) {
    %c0_i32 = arith.constant 0 : i32
    %c0_i32_0 = arith.constant 0 : i32
    %c0_i32_1 = arith.constant 0 : i32
    return %c0_i32, %arg0, %c0_i32_0 : i32, i32, i32
  }
  func.func @transform_2(%arg0: i32) -> (i32, i32, i32) {
    %c0_i32 = arith.constant 0 : i32
    %c0_i32_0 = arith.constant 0 : i32
    %c0_i32_1 = arith.constant 0 : i32
    return %c0_i32, %arg0, %c0_i32_0 : i32, i32, i32
  }
}

</mosaic_0001>

<llo_original>
// kernel: network_forward.1
$region0: #{network_forward.1}
  #allocation0 [shape = 'u32[]', space=smem, size = 0x4, offset = 0x4, fixed_abs, tag = 'smem constant byte address 0x4 - core index']
  #allocation1 [shape = 'u32[72,128]{1,0:T(1,128)}', space=vmem, size = 0x9000, scoped, tag = 'internal scratch']
  %s0 = inlined_call_operand.vmem [shape: f32[23], index: 0, kind: input, shape index: {}]
  %s1 = inlined_call_operand.vmem [shape: f32[2,1,128], index: 1, kind: input, shape index: {}]
  %s2 = inlined_call_operand.vmem [shape: f32[2,1,128], index: 2, kind: output, shape index: {}]
  %s3 = sld [smem:[#allocation0]]
  $region22: #{network_forward.1} parent=0
    _
  %s5 = ssub.s32 1, %s3
  %s6 = scalar_select 0, %s5, %s3
  $region1: #{network_forward.1} parent=0
    #allocation2 [shape = 'u8[512]{0}', space=smem, size = 0x200, scoped, tag = 'input window, operand 0, single buffered']
    #allocation3 [shape = 's32[1]{0}', space=sflag, size = 0x4, scoped, tag = 'scoped memory for network_forward.1']
    %7 = vsyncpa [#allocation3], 0
    // Predicated region
    $region2: #{network_forward.1} parent=1 // pred_check
      _
    $region3: #{network_forward.1} parent=1 // pred_check_branch
      %9 = sbr.rel (0) target = $region5
    $region4: #{network_forward.1} parent=1 // pred_region
      %11 = vsyncadd [#allocation3], 0
      %s13 = sshll.u32 %s0, 4
      %s14 = int_to_ptr.vmem [resolvable:$true] %s13
      %16 = dma.vmem_to_smem %s14, 16, [#allocation2], [#allocation3]
    $region5: #{network_forward.1} parent=1 // pred_fallthru
      _
    // Predicated region
    $region6: #{network_forward.1} parent=1 // pred_check
      _
    $region7: #{network_forward.1} parent=1 // pred_check_branch
      %18 = sbr.rel (0) target = $region9
    $region8: #{network_forward.1} parent=1 // pred_region
      _
    $region9: #{network_forward.1} parent=1 // pred_fallthru
      _
    // Predicated region
    $region10: #{network_forward.1} parent=1 // pred_check
      _
    $region11: #{network_forward.1} parent=1 // pred_check_branch
      %20 = sbr.rel (0) target = $region13
    $region12: #{network_forward.1} parent=1 // pred_region
      %22 = dma.done [#allocation3], 16
    $region13: #{network_forward.1} parent=1 // pred_fallthru
      _
    %23 = sfence
    %v24 = vld [vmem:[%s1] sm:$0x1]
    %s25 = scalar_lea.vmem %s1, 1
    %v26 = vld [vmem:[%s25] sm:$0x1]
    %s27 = sld [smem:[#allocation2]]
    %v28 = vstv %s27
    %v29 = vmul.f32 %v28, %v24
    %s30 = sld [smem:[#allocation2 + $0x1]]
    %v31 = vstv %s30
    %v32 = vmul.f32 %v31, %v26
    %v33 = vadd.f32 %v29, %v32
    %s34 = sld [smem:[#allocation2 + $0x6]]
    %v35 = vstv %s34
    %v36 = vadd.f32 %v33, %v35
    %v37 = vsub.f32 0.0, %v36
    %v38 = vmul.f32 %v37, 1.442695
    %v39 = vpow.pop %v38
    %v40 = vadd.f32 %v39, 1.0
    %v41 = vrcp.pop %v40
    %v42 = vmul.f32 %v40, %v41
    %v43 = vsub.f32 1.0, %v42
    %v44 = vmul.f32 %v41, %v43
    %v45 = vadd.f32 %v41, %v44
    %vm46 = vweird.f32 %v40
    %vm47 = vweird.f32 %v41
    %vm48 = vmor %vm46, %vm47
    %v49 = vsel %vm48, %v41, %v45
    %v50 = vand.u32 2147483647, %v40
    %vm51 = vcmp.eq.f32.partialorder %v50, 8.507059e+37
    %v52 = vand.u32 %v40, 2147483648
    %v53 = vor.u32 1.1754944e-38, %v52
    %v54 = vsel %vm51, %v53, %v49
    %v55 = vmul.f32 1.0, %v54
    %s56 = sld [smem:[#allocation2 + $0x2]]
    %v57 = vstv %s56
    %v58 = vmul.f32 %v57, %v24
    %s59 = sld [smem:[#allocation2 + $0x3]]
    %v60 = vstv %s59
    %v61 = vmul.f32 %v60, %v26
    %v62 = vadd.f32 %v58, %v61
    %s63 = sld [smem:[#allocation2 + $0x7]]
    %v64 = vstv %s63
    %v65 = vadd.f32 %v62, %v64
    %v66 = vsub.f32 0.0, %v65
    %v67 = vmul.f32 %v66, 1.442695
    %v68 = vpow.pop %v67
    %v69 = vadd.f32 %v68, 1.0
    %v70 = vrcp.pop %v69
    %v71 = vmul.f32 %v69, %v70
    %v72 = vsub.f32 1.0, %v71
    %v73 = vmul.f32 %v70, %v72
    %v74 = vadd.f32 %v70, %v73
    %vm75 = vweird.f32 %v69
    %vm76 = vweird.f32 %v70
    %vm77 = vmor %vm75, %vm76
    %v78 = vsel %vm77, %v70, %v74
    %v79 = vand.u32 2147483647, %v69
    %vm80 = vcmp.eq.f32.partialorder %v79, 8.507059e+37
    %v81 = vand.u32 %v69, 2147483648
    %v82 = vor.u32 1.1754944e-38, %v81
    %v83 = vsel %vm80, %v82, %v78
    %v84 = vmul.f32 1.0, %v83
    %s85 = sld [smem:[#allocation2 + $0x4]]
    %v86 = vstv %s85
    %v87 = vmul.f32 %v86, %v24
    %s88 = sld [smem:[#allocation2 + $0x5]]
    %v89 = vstv %s88
    %v90 = vmul.f32 %v89, %v26
    %v91 = vadd.f32 %v87, %v90
    %s92 = sld [smem:[#allocation2 + $0x8]]
    %v93 = vstv %s92
    %v94 = vadd.f32 %v91, %v93
    %v95 = vsub.f32 0.0, %v94
    %v96 = vmul.f32 %v95, 1.442695
    %v97 = vpow.pop %v96
    %v98 = vadd.f32 %v97, 1.0
    %v99 = vrcp.pop %v98
    %v100 = vmul.f32 %v98, %v99
    %v101 = vsub.f32 1.0, %v100
    %v102 = vmul.f32 %v99, %v101
    %v103 = vadd.f32 %v99, %v102
    %vm104 = vweird.f32 %v98
    %vm105 = vweird.f32 %v99
    %vm106 = vmor %vm104, %vm105
    %v107 = vsel %vm106, %v99, %v103
    %v108 = vand.u32 2147483647, %v98
    %vm109 = vcmp.eq.f32.partialorder %v108, 8.507059e+37
    %v110 = vand.u32 %v98, 2147483648
    %v111 = vor.u32 1.1754944e-38, %v110
    %v112 = vsel %vm109, %v111, %v107
    %v113 = vmul.f32 1.0, %v112
    %s114 = sld [smem:[#allocation2 + $0x9]]
    %v115 = vstv %s114
    %v116 = vmul.f32 %v115, %v55
    %s117 = sld [smem:[#allocation2 + $0xa]]
    %v118 = vstv %s117
    %v119 = vmul.f32 %v118, %v84
    %v120 = vadd.f32 %v116, %v119
    %s121 = sld [smem:[#allocation2 + $0xb]]
    %v122 = vstv %s121
    %v123 = vmul.f32 %v122, %v113
    %v124 = vadd.f32 %v120, %v123
    %s125 = sld [smem:[#allocation2 + $0xf]]
    %v126 = vstv %s125
    %v127 = vadd.f32 %v124, %v126
    %v128 = vsub.f32 0.0, %v127
    %v129 = vmul.f32 %v128, 1.442695
    %v130 = vpow.pop %v129
    %v131 = vadd.f32 %v130, 1.0
    %v132 = vrcp.pop %v131
    %v133 = vmul.f32 %v131, %v132
    %v134 = vsub.f32 1.0, %v133
    %v135 = vmul.f32 %v132, %v134
    %v136 = vadd.f32 %v132, %v135
    %vm137 = vweird.f32 %v131
    %vm138 = vweird.f32 %v132
    %vm139 = vmor %vm137, %vm138
    %v140 = vsel %vm139, %v132, %v136
    %v141 = vand.u32 2147483647, %v131
    %vm142 = vcmp.eq.f32.partialorder %v141, 8.507059e+37
    %v143 = vand.u32 %v131, 2147483648
    %v144 = vor.u32 1.1754944e-38, %v143
    %v145 = vsel %vm142, %v144, %v140
    %v146 = vmul.f32 1.0, %v145
    %s147 = sld [smem:[#allocation2 + $0xc]]
    %v148 = vstv %s147
    %v149 = vmul.f32 %v148, %v55
    %s150 = sld [smem:[#allocation2 + $0xd]]
    %v151 = vstv %s150
    %v152 = vmul.f32 %v151, %v84
    %v153 = vadd.f32 %v149, %v152
    %s154 = sld [smem:[#allocation2 + $0xe]]
    %v155 = vstv %s154
    %v156 = vmul.f32 %v155, %v113
    %v157 = vadd.f32 %v153, %v156
    %s158 = sld [smem:[#allocation2 + $0x10]]
    %v159 = vstv %s158
    %v160 = vadd.f32 %v157, %v159
    %v161 = vsub.f32 0.0, %v160
    %v162 = vmul.f32 %v161, 1.442695
    %v163 = vpow.pop %v162
    %v164 = vadd.f32 %v163, 1.0
    %v165 = vrcp.pop %v164
    %v166 = vmul.f32 %v164, %v165
    %v167 = vsub.f32 1.0, %v166
    %v168 = vmul.f32 %v165, %v167
    %v169 = vadd.f32 %v165, %v168
    %vm170 = vweird.f32 %v164
    %vm171 = vweird.f32 %v165
    %vm172 = vmor %vm170, %vm171
    %v173 = vsel %vm172, %v165, %v169
    %v174 = vand.u32 2147483647, %v164
    %vm175 = vcmp.eq.f32.partialorder %v174, 8.507059e+37
    %v176 = vand.u32 %v164, 2147483648
    %v177 = vor.u32 1.1754944e-38, %v176
    %v178 = vsel %vm175, %v177, %v173
    %v179 = vmul.f32 1.0, %v178
    %s180 = sld [smem:[#allocation2 + $0x11]]
    %v181 = vstv %s180
    %v182 = vmul.f32 %v181, %v146
    %s183 = sld [smem:[#allocation2 + $0x12]]
    %v184 = vstv %s183
    %v185 = vmul.f32 %v184, %v179
    %v186 = vadd.f32 %v182, %v185
    %s187 = sld [smem:[#allocation2 + $0x15]]
    %v188 = vstv %s187
    %v189 = vadd.f32 %v186, %v188
    %190 = vst [vmem:[%s2] sm:$0x1] %v189
    %s191 = sld [smem:[#allocation2 + $0x13]]
    %v192 = vstv %s191
    %v193 = vmul.f32 %v192, %v146
    %s194 = sld [smem:[#allocation2 + $0x14]]
    %v195 = vstv %s194
    %v196 = vmul.f32 %v195, %v179
    %v197 = vadd.f32 %v193, %v196
    %s198 = sld [smem:[#allocation2 + $0x16]]
    %v199 = vstv %s198
    %v200 = vadd.f32 %v197, %v199
    %s201 = scalar_lea.vmem %s2, 1
    %202 = vst [vmem:[%s201] sm:$0x1] %v200
    // Predicated region
    $region14: #{network_forward.1} parent=1 // pred_check
      _
    $region15: #{network_forward.1} parent=1 // pred_check_branch
      %204 = sbr.rel (0) target = $region17
    $region16: #{network_forward.1} parent=1 // pred_region
      _
    $region17: #{network_forward.1} parent=1 // pred_fallthru
      _
    // Predicated region
    $region18: #{network_forward.1} parent=1 // pred_check
      _
    $region19: #{network_forward.1} parent=1 // pred_check_branch
      %206 = sbr.rel (0) target = $region21
    $region20: #{network_forward.1} parent=1 // pred_region
      _
    $region21: #{network_forward.1} parent=1 // pred_fallthru
      _
    %207 = vsyncpa [#allocation3], 1

</llo_original>
